<compile_context>
chip_gen: v7x
topology: tpu7x:2x2x1
jax: 0.10.0
libtpu: 0.0.40
codegen_flags: <defaults>
</compile_context>

<pallas_src>
import functools
import math

import jax
import jax.numpy as jnp
import numpy as np
from jax.experimental import pallas as pl
from jax.experimental.pallas import tpu as pltpu


# ------------------------------ kernel --------------------------------------

def _affine_kernel(z_ref, ab_ref, out_ref):
    """out = z * a + b, with the packed (2, C) coefficients broadcast over rows."""
    a = ab_ref[0:1, :]
    b = ab_ref[1:2, :]
    z = z_ref[...].astype(ab_ref.dtype)          # no-op when dtypes already match
    out_ref[...] = (z * a + b).astype(out_ref.dtype)


# ------------------------------ hardware query --------------------------------

@functools.lru_cache(maxsize=1)
def _vmem_capacity_bytes():
    """Physical VMEM capacity (128 MiB v5e/v6e, 64 MiB v7x); conservative fallback."""
    try:
        cap = int(getattr(pltpu.get_tpu_info(), "vmem_capacity_bytes"))
        if cap > 0:
            return cap
    except Exception:
        pass
    return 64 * 1024 * 1024   # v7x-sized default: safe on every generation


# ------------------------------ layout helpers -------------------------------

def _choose_fold(M, D, max_lane=4096):
    """Pick a fold factor k (divisor of M) so [M, D] can be viewed as
    [M/k, k*D] with a lane-dense minor dimension.  Prefers k*D % 128 == 0
    (fully unmasked vector stores); otherwise the largest divisor in range
    (only the last vreg per row masked)."""
    if M <= 1 or D >= max_lane:
        return 1
    k_align = 128 // math.gcd(D, 128)          # smallest k with (k*D) % 128 == 0
    k_cap = max(1, max_lane // D)
    best_aligned, best_any = 1, 1
    for k in range(2, min(M, k_cap) + 1):
        if M % k:
            continue
        best_any = k
        if k % k_align == 0:
            best_aligned = k
    if best_aligned > 1:
        return best_aligned
    if M <= k_cap:
        return M                               # whole array folds into one row
    return best_any


def _choose_tm(R, C, itemsize, bytes_per_buffer):
    """Row-tile size from a VMEM byte budget, rounded to the dtype's sublane
    packing, and capped so R > 32 always yields >= 2 grid steps (v7x megacore)."""
    sub = max(8, 32 // itemsize)               # f32: 8, bf16: 16, int8/fp8: 32
    tm = max(sub, bytes_per_buffer // (C * itemsize))
    tm = (tm // sub) * sub
    if R > 32:
        half = -(-((R + 1) // 2) // sub) * sub   # ceil(R/2) rounded up to sublanes
        tm = min(tm, half)
    if tm >= R:
        return R                                # full-dim block is always legal
    return max(sub, tm)


def _coef_dtype(z_dtype):
    # bf16 inputs compute natively in bf16 (v6e/v7x bf16 VPU); else f32.
    return jnp.bfloat16 if z_dtype == jnp.bfloat16 else jnp.float32


# ------------------------------ pallas wrapper --------------------------------

def _affine_call(z2, ab2):
    R, C = int(z2.shape[0]), int(z2.shape[1])
    itemsize = jnp.dtype(z2.dtype).itemsize
    cap = _vmem_capacity_bytes()
    bytes_per_buffer = max(1 << 20, cap // 16)        # 8 MiB v5e/v6e, 4 MiB v7x
    vmem_limit = int(min(cap // 2, 64 * 1024 * 1024))  # 64 MiB v5e/v6e, 32 MiB v7x
    tm = _choose_tm(R, C, itemsize, bytes_per_buffer)

    cost = pl.CostEstimate(
        flops=2 * R * C,
        transcendentals=0,
        bytes_accessed=2 * R * C * itemsize + 2 * C * jnp.dtype(ab2.dtype).itemsize,
    )

    return pl.pallas_call(
        _affine_kernel,
        out_shape=jax.ShapeDtypeStruct((R, C), z2.dtype),
        grid=(pl.cdiv(R, tm),),
        in_specs=[
            pl.BlockSpec((tm, C), lambda i: (i, 0)),   # z row tile
            pl.BlockSpec((2, C), lambda i: (0, 0)),    # packed (a; b) coefficients
        ],
        out_specs=pl.BlockSpec((tm, C), lambda i: (i, 0)),
        compiler_params=pltpu.CompilerParams(
            dimension_semantics=("parallel",),
            vmem_limit_bytes=vmem_limit,
        ),
        cost_estimate=cost,
    )(z2, ab2)


def _apply_affine(z, a_vec, b_vec):
    """Apply out = z * a + b where a, b are per-feature [D] f32 coefficients."""
    orig_shape = z.shape
    D = int(orig_shape[-1])
    M = 1
    for s in orig_shape[:-1]:
        M *= int(s)
    if M == 0 or D == 0:
        return z

    k = _choose_fold(M, D)
    R, C = M // k, k * D

    z2 = z.reshape(R, C)                               # contiguous reshape: free
    cdt = _coef_dtype(z.dtype)
    ab = jnp.stack([jnp.tile(a_vec.astype(jnp.float32), k),
                    jnp.tile(b_vec.astype(jnp.float32), k)]).astype(cdt)

    out = _affine_call(z2, ab)
    return out.reshape(orig_shape)


# ------------------------- coefficient precompute ----------------------------
# Computed exactly in f32 in the wrapper (tiny [D]-sized vector ops); the
# kernel is a single FMA per element.

def _minmax_norm_coeffs(min_val, max_val, eps):
    mn = min_val.astype(jnp.float32)
    mx = max_val.astype(jnp.float32)
    r = 1.0 / (mx - mn + eps)
    return 2.0 * r, -2.0 * mn * r - 1.0


def _minmax_unnorm_coeffs(min_val, max_val, eps):
    mn = min_val.astype(jnp.float32)
    mx = max_val.astype(jnp.float32)
    s = mx - mn + eps
    return 0.5 * s, 0.5 * s + mn


def _std_norm_coeffs(mu, std, eps):
    r = 1.0 / (std.astype(jnp.float32) + eps)
    return r, -mu.astype(jnp.float32) * r


def _std_unnorm_coeffs(mu, std, eps):
    return std.astype(jnp.float32) + eps, mu.astype(jnp.float32)


# ------------------------------ module ---------------------------------------

class ParticleNormalizationPallas:
    """JAX/Pallas re-implementation of ParticleNormalization.forward().

    Statistics buffers (mu/std/min_val/max_val and *_bg versions) are plain
    jnp arrays set deterministically in-script; the normalize/unnormalize
    elementwise math runs inside a single fused-affine Pallas kernel.
    """

    def __init__(self, particle_feature_dim, mode='minmax', eps=1e-5):
        assert mode in ['minmax', 'std'], f'mode: {mode} not supported'
        self.mode = mode
        self.eps = eps
        self.particle_feature_dim = particle_feature_dim
        self.fg_total_dim = 2 + 2 + 2 + particle_feature_dim
        self.bg_total_dim = particle_feature_dim
        # Same defaults as the torch module __init__ (before stat loading):
        self.mu = jnp.zeros((self.fg_total_dim,), jnp.float32)
        self.mu_bg = jnp.zeros((self.bg_total_dim,), jnp.float32)
        self.std = jnp.ones((self.fg_total_dim,), jnp.float32)
        self.std_bg = jnp.ones((self.bg_total_dim,), jnp.float32)
        self.min_val = jnp.zeros((self.fg_total_dim,), jnp.float32)
        self.max_val = jnp.zeros((self.fg_total_dim,), jnp.float32)
        self.min_val_bg = jnp.zeros((self.bg_total_dim,), jnp.float32)
        self.max_val_bg = jnp.zeros((self.bg_total_dim,), jnp.float32)
        # TODO(synk): stats are computed from a full DDLP model + dataset pass in
        # the original (calc_latent_stats); here they are set deterministically
        # in-script instead of loading latent_stats.pth.

    # -- public API mirroring the torch module --

    def normalize(self, z=None, z_bg=None):
        if self.mode == 'minmax':
            if z is not None:
                a, b = _minmax_norm_coeffs(self.min_val, self.max_val, self.eps)
                z = _apply_affine(z, a, b)
            if z_bg is not None:
                a, b = _minmax_norm_coeffs(self.min_val_bg, self.max_val_bg, self.eps)
                z_bg = _apply_affine(z_bg, a, b)
        else:
            if z is not None:
                a, b = _std_norm_coeffs(self.mu, self.std, self.eps)
                z = _apply_affine(z, a, b)
            if z_bg is not None:
                a, b = _std_norm_coeffs(self.mu_bg, self.std_bg, self.eps)
                z_bg = _apply_affine(z_bg, a, b)
        return (z, z_bg)

    def unnormalize(self, z=None, z_bg=None):
        if self.mode == 'minmax':
            if z is not None:
                a, b = _minmax_unnorm_coeffs(self.min_val, self.max_val, self.eps)
                z = _apply_affine(z, a, b)
            if z_bg is not None:
                a, b = _minmax_unnorm_coeffs(self.min_val_bg, self.max_val_bg, self.eps)
                z_bg = _apply_affine(z_bg, a, b)
        else:
            if z is not None:
                a, b = _std_unnorm_coeffs(self.mu, self.std, self.eps)
                z = _apply_affine(z, a, b)
            if z_bg is not None:
                a, b = _std_unnorm_coeffs(self.mu_bg, self.std_bg, self.eps)
                z_bg = _apply_affine(z_bg, a, b)
        return (z, z_bg)

    def forward(self, z=None, z_bg=None, normalize=True):
        if normalize:
            return self.normalize(z, z_bg)
        return self.unnormalize(z, z_bg)

    __call__ = forward


# ------------------------------ reference ------------------------------------

def _ref_normalize_minmax(z, mn, mx, eps):
    zz = (z - mn) / (mx - mn + eps)
    return 2.0 * zz - 1.0


def _ref_unnormalize_minmax(z, mn, mx, eps):
    zz = (z + 1.0) / 2.0
    return zz * (mx - mn + eps) + mn


def _ref_normalize_std(z, mu, std, eps):
    return (z - mu) / (std + eps)


# ------------------------------ main ------------------------------------------

if __name__ == "__main__":
    key = jax.random.PRNGKey(0)
    k_stats_fg, k_stats_bg, k_z, k_zbg, k_mu, k_std, k_odd = jax.random.split(key, 7)

    particle_feature_dim = 32
    fg_dim = 2 + 2 + 2 + particle_feature_dim      # 38
    bg_dim = particle_feature_dim                  # 32

    norm = ParticleNormalizationPallas(particle_feature_dim, mode='minmax', eps=1e-5)

    # Deterministic synthetic latent statistics (stand-in for calc_latent_stats).
    sfg = jax.random.uniform(k_stats_fg, (2, fg_dim), jnp.float32)
    sbg = jax.random.uniform(k_stats_bg, (2, bg_dim), jnp.float32)
    norm.min_val = -(sfg[0] + 0.1)
    norm.max_val = sfg[1] + 0.5
    norm.min_val_bg = -(sbg[0] + 0.1)
    norm.max_val_bg = sbg[1] + 0.5
    norm.mu = jax.random.normal(k_mu, (fg_dim,), jnp.float32)
    norm.std = jax.random.uniform(k_std, (fg_dim,), jnp.float32) + 0.5
    norm.mu_bg = norm.mu[:bg_dim]
    norm.std_bg = norm.std[:bg_dim]

    # Inputs: fg particles (batch, time, n_particles, fg_dim), bg (batch, time, bg_dim)
    z = jax.random.normal(k_z, (2, 4, 8, fg_dim), jnp.float32)
    z_bg = jax.random.normal(k_zbg, (2, 4, bg_dim), jnp.float32)

    # ---- minmax normalize ----
    z_n, z_bg_n = norm(z=z, z_bg=z_bg, normalize=True)
    jax.block_until_ready(z_n)
    jax.block_until_ready(z_bg_n)

    z_n_ref = _ref_normalize_minmax(z, norm.min_val, norm.max_val, norm.eps)
    z_bg_n_ref = _ref_normalize_minmax(z_bg, norm.min_val_bg, norm.max_val_bg, norm.eps)
    np.testing.assert_allclose(np.asarray(z_n), np.asarray(z_n_ref), rtol=1e-5, atol=1e-5)
    np.testing.assert_allclose(np.asarray(z_bg_n), np.asarray(z_bg_n_ref), rtol=1e-5, atol=1e-5)

    # ---- minmax unnormalize (round trip) ----
    z_u, z_bg_u = norm(z=z_n, z_bg=z_bg_n, normalize=False)
    jax.block_until_ready(z_u)
    z_u_ref = _ref_unnormalize_minmax(z_n_ref, norm.min_val, norm.max_val, norm.eps)
    np.testing.assert_allclose(np.asarray(z_u), np.asarray(z_u_ref), rtol=1e-5, atol=1e-5)
    np.testing.assert_allclose(np.asarray(z_u), np.asarray(z), rtol=1e-4, atol=1e-4)

    # ---- std mode ----
    norm.mode = 'std'
    z_s, z_bg_s = norm(z=z, z_bg=z_bg, normalize=True)
    jax.block_until_ready(z_s)
    z_s_ref = _ref_normalize_std(z, norm.mu, norm.std, norm.eps)
    z_bg_s_ref = _ref_normalize_std(z_bg, norm.mu_bg, norm.std_bg, norm.eps)
    np.testing.assert_allclose(np.asarray(z_s), np.asarray(z_s_ref), rtol=1e-5, atol=1e-5)
    np.testing.assert_allclose(np.asarray(z_bg_s), np.asarray(z_bg_s_ref), rtol=1e-5, atol=1e-5)

    # ---- std unnormalize (round trip) ----
    z_su, z_bg_su = norm(z=z_s, z_bg=z_bg_s, normalize=False)
    jax.block_until_ready(z_su)
    np.testing.assert_allclose(np.asarray(z_su), np.asarray(z), rtol=1e-4, atol=1e-4)
    np.testing.assert_allclose(np.asarray(z_bg_su), np.asarray(z_bg), rtol=1e-4, atol=1e-4)

    # ---- awkward M (no 128-aligned fold divides M): fallback divisor path ----
    norm.mode = 'minmax'
    z_odd = jax.random.normal(k_odd, (3, 5, fg_dim), jnp.float32)
    z_odd_n, _ = norm(z=z_odd, normalize=True)
    jax.block_until_ready(z_odd_n)
    z_odd_ref = _ref_normalize_minmax(z_odd, norm.min_val, norm.max_val, norm.eps)
    np.testing.assert_allclose(np.asarray(z_odd_n), np.asarray(z_odd_ref), rtol=1e-5, atol=1e-5)

    # ---- bf16 inputs: native bf16 compute path (loose tolerance) ----
    z_bf16 = z.astype(jnp.bfloat16)
    z_bf16_n, _ = norm(z=z_bf16, normalize=True)
    jax.block_until_ready(z_bf16_n)
    np.testing.assert_allclose(np.asarray(z_bf16_n, dtype=np.float32),
                               np.asarray(z_n_ref), rtol=5e-2, atol=5e-2)

    print("KERNEL_OK")
</pallas_src>

<mosaic_0001>
module attributes {stable_mosaic.version = 11 : i64} {
  func.func @_affine_kernel(%arg0: i32, %arg1: memref<1x2432xf32, #tpu.memory_space<vmem>>, %arg2: memref<2x2432xf32, #tpu.memory_space<vmem>>, %arg3: memref<1x2432xf32, #tpu.memory_space<vmem>>) attributes {dimension_semantics = [#tpu.dimension_semantics<parallel>], iteration_bounds = array<i64: 1>, scalar_prefetch = 0 : i64, scratch_operands = 0 : i64, tpu.core_type = #tpu.core_type<tc>, window_params = [{transform_indices = @transform_0, window_bounds = array<i64: 1, 2432>}, {pipeline_mode = #tpu.pipeline_mode<synchronous>, transform_indices = @transform_1, window_bounds = array<i64: 2, 2432>}, {transform_indices = @transform_2, window_bounds = array<i64: 1, 2432>}]} {
    %c0 = arith.constant 0 : index
    %c0_0 = arith.constant 0 : index
    %0 = vector.load %arg2[%c0, %c0_0] : memref<2x2432xf32, #tpu.memory_space<vmem>>, vector<1x2432xf32>
    %c1 = arith.constant 1 : index
    %c0_1 = arith.constant 0 : index
    %1 = vector.load %arg2[%c1, %c0_1] : memref<2x2432xf32, #tpu.memory_space<vmem>>, vector<1x2432xf32>
    %c0_2 = arith.constant 0 : index
    %c0_3 = arith.constant 0 : index
    %2 = vector.load %arg1[%c0_2, %c0_3] : memref<1x2432xf32, #tpu.memory_space<vmem>>, vector<1x2432xf32>
    %3 = arith.mulf %2, %0 : vector<1x2432xf32>
    %4 = arith.addf %3, %1 : vector<1x2432xf32>
    %c0_4 = arith.constant 0 : index
    %c0_5 = arith.constant 0 : index
    %5 = vector.load %arg3[%c0_4, %c0_5] : memref<1x2432xf32, #tpu.memory_space<vmem>>, vector<1x2432xf32>
    tpu.vector_store %arg3[%c0_4, %c0_5], %4 {strides = array<i32>} : memref<1x2432xf32, #tpu.memory_space<vmem>>, vector<1x2432xf32>,
    return
  }
  func.func @transform_0(%arg0: i32) -> (i32, i32) {
    %c0_i32 = arith.constant 0 : i32
    %c0_i32_0 = arith.constant 0 : i32
    return %arg0, %c0_i32 : i32, i32
  }
  func.func @transform_1(%arg0: i32) -> (i32, i32) {
    %c0_i32 = arith.constant 0 : i32
    %c0_i32_0 = arith.constant 0 : i32
    %c0_i32_1 = arith.constant 0 : i32
    return %c0_i32, %c0_i32_0 : i32, i32
  }
  func.func @transform_2(%arg0: i32) -> (i32, i32) {
    %c0_i32 = arith.constant 0 : i32
    %c0_i32_0 = arith.constant 0 : i32
    return %arg0, %c0_i32 : i32, i32
  }
}

</mosaic_0001>

<llo_original>
// kernel: tpu_custom_call.1
$region0: #{tpu_custom_call.1}
  #allocation0 [shape = 'u32[]', space=smem, size = 0x4, offset = 0x4, fixed_abs, tag = 'smem constant byte address 0x4 - core index']
  #allocation1 [shape = 'u32[144,128]{1,0:T(1,128)}', space=vmem, size = 0x12000, scoped, tag = 'internal scratch']
  %s0 = inlined_call_operand.hbm [shape: f32[1,2432], index: 0, kind: input, shape index: {}]
  %s1 = inlined_call_operand.hbm [shape: f32[2,2432], index: 1, kind: input, shape index: {}]
  %s2 = inlined_call_operand.hbm [shape: f32[1,2432], index: 2, kind: output, shape index: {}]
  %s3 = sld [smem:[#allocation0]]
  $region26: #{tpu_custom_call.1} parent=0
    _
  %s5 = ssub.s32 1, %s3
  %s6 = scalar_select 0, %s5, %s3
  $region1: #{tpu_custom_call.1} parent=0
    #allocation2 [shape = 'u8[9728]{0}', space=vmem, size = 0x2800, scoped, tag = 'input window, operand 0, single buffered']
    #allocation3 [shape = 's32[1]{0}', space=sflag, size = 0x4, scoped, tag = 'scoped memory for tpu_custom_call.1']
    #allocation4 [shape = 's32[1]{0}', space=sflag, size = 0x4, scoped, tag = 'scoped memory for tpu_custom_call.1']
    #allocation5 [shape = 'u8[19456]{0}', space=vmem, size = 0x4c00, scoped, tag = 'input window, operand 1, single buffered']
    #allocation6 [shape = 's32[1]{0}', space=sflag, size = 0x4, scoped, tag = 'scoped memory for tpu_custom_call.1']
    #allocation7 [shape = 'u8[9728]{0}', space=vmem, size = 0x2800, scoped, tag = 'output window, operand 0, single buffered']
    %7 = vsyncpa [#allocation3], 0
    %8 = vsyncpa [#allocation6], 0
    %9 = vsyncpa [#allocation4], 0
    // Predicated region
    $region2: #{tpu_custom_call.1} parent=1 // pred_check
      _
    $region3: #{tpu_custom_call.1} parent=1 // pred_check_branch
      %11 = sbr.rel (0) target = $region5
    $region4: #{tpu_custom_call.1} parent=1 // pred_region
      %s13 = ssub.s32 304, 304
      %14 = vsyncadd [#allocation3], %s13
      %s16 = sshll.u32 [#allocation2], 4
      %s17 = int_to_ptr.vmem [resolvable:$true] %s16
      %19 = dma.hbm_to_vmem [thread:$0]  %s0, 304, %s17, [#allocation3]
    $region5: #{tpu_custom_call.1} parent=1 // pred_fallthru
      _
    // Predicated region
    $region6: #{tpu_custom_call.1} parent=1 // pred_check
      _
    $region7: #{tpu_custom_call.1} parent=1 // pred_check_branch
      %21 = sbr.rel (0) target = $region9
    $region8: #{tpu_custom_call.1} parent=1 // pred_region
      %s23 = ssub.s32 608, 608
      %24 = vsyncadd [#allocation6], %s23
      %s26 = sshll.u32 [#allocation5], 4
      %s27 = int_to_ptr.vmem [resolvable:$true] %s26
      %29 = dma.hbm_to_vmem [thread:$0]  %s1, 608, %s27, [#allocation6]
    $region9: #{tpu_custom_call.1} parent=1 // pred_fallthru
      _
    // Predicated region
    $region10: #{tpu_custom_call.1} parent=1 // pred_check
      _
    $region11: #{tpu_custom_call.1} parent=1 // pred_check_branch
      %31 = sbr.rel (0) target = $region13
    $region12: #{tpu_custom_call.1} parent=1 // pred_region
      %32 = dma.done [#allocation3], 304
    $region13: #{tpu_custom_call.1} parent=1 // pred_fallthru
      _
    // Predicated region
    $region14: #{tpu_custom_call.1} parent=1 // pred_check
      _
    $region15: #{tpu_custom_call.1} parent=1 // pred_check_branch
      %34 = sbr.rel (0) target = $region17
    $region16: #{tpu_custom_call.1} parent=1 // pred_region
      %35 = dma.done [#allocation6], 608
    $region17: #{tpu_custom_call.1} parent=1 // pred_fallthru
      _
    %v36 = vld [vmem:[#allocation5] ss:$2 sm:$0xff]
    %s37 = scalar_lea.vmem [#allocation5], 16
    %v38 = vld [vmem:[%s37] ss:$2 sm:$0xff]
    %s39 = scalar_lea.vmem [#allocation5], 32
    %v40 = vld [vmem:[%s39] ss:$2 sm:$0x7]
    %s41 = scalar_lea.vmem [#allocation5], 1
    %v42 = vld [vmem:[%s41] ss:$2 sm:$0xff]
    %s43 = scalar_lea.vmem [#allocation5], 17
    %v44 = vld [vmem:[%s43] ss:$2 sm:$0xff]
    %s45 = scalar_lea.vmem [#allocation5], 33
    %v46 = vld [vmem:[%s45] ss:$2 sm:$0x7]
    %v47 = vld [vmem:[#allocation2] sm:$0xff]
    %v48 = vld [vmem:[#allocation2 + $0x8] sm:$0xff]
    %v49 = vld [vmem:[#allocation2 + $0x10] sm:$0x7]
    %v50 = vmul.f32 %v47, %v36
    %v51 = vmul.f32 %v48, %v38
    %v52 = vmul.f32 %v49, %v40
    %v53 = vadd.f32 %v50, %v42
    %v54 = vadd.f32 %v51, %v44
    %v55 = vadd.f32 %v52, %v46
    %56 = vst [vmem:[#allocation7] sm:$0xff] %v53
    %57 = vst [vmem:[#allocation7 + $0x8] sm:$0xff] %v54
    %v58 = vlaneseq
    %vm59 = vcmp.ge.s32.totalorder %v58, 0
    %vm60 = vcmp.lt.s32.totalorder %v58, 384
    %vm61 = vmand %vm59, %vm60
    %62 = vst.msk [vmem:[#allocation7 + $0x10] sm:$0x7] %vm61, %v55
    // Predicated region
    $region18: #{tpu_custom_call.1} parent=1 // pred_check
      _
    $region19: #{tpu_custom_call.1} parent=1 // pred_check_branch
      %64 = sbr.rel (0) target = $region21
    $region20: #{tpu_custom_call.1} parent=1 // pred_region
      %s66 = ssub.s32 304, 304
      %67 = vsyncadd [#allocation4], %s66
      %s69 = sshll.u32 [#allocation7], 4
      %s70 = int_to_ptr.vmem [resolvable:$true] %s69
      %72 = dma.vmem_to_hbm [thread:$0]  %s70, 304, %s2, [#allocation4]
    $region21: #{tpu_custom_call.1} parent=1 // pred_fallthru
      _
    // Predicated region
    $region22: #{tpu_custom_call.1} parent=1 // pred_check
      _
    $region23: #{tpu_custom_call.1} parent=1 // pred_check_branch
      %74 = sbr.rel (0) target = $region25
    $region24: #{tpu_custom_call.1} parent=1 // pred_region
      %75 = dma.done [#allocation4], 304
    $region25: #{tpu_custom_call.1} parent=1 // pred_fallthru
      _
    %76 = vsyncpa [#allocation3], 1
    %77 = vsyncpa [#allocation6], 1
    %78 = vsyncpa [#allocation4], 1

</llo_original>
